<compile_context>
chip_gen: v7x
topology: tpu7x:2x2x1
jax: 0.10.0
libtpu: 0.0.40
codegen_flags: <defaults>
</compile_context>

<pallas_src>
import functools

import jax
import jax.numpy as jnp
from jax import lax
from jax.experimental import pallas as pl
from jax.experimental.pallas import tpu as pltpu


def _round_up(x, m):
    return ((x + m - 1) // m) * m


def _pick_block(total, cap):
    """Block size: multiple of 8, <= cap.  Inputs are padded to a multiple of it."""
    blk = min(cap, _round_up(max(int(total), 1), 8))
    blk -= blk % 8
    return max(blk, 8)


# ---------------------------------------------------------------------------
# Kernel 1: node embedding gather as a one-hot MXU matmul
# ---------------------------------------------------------------------------
def _node_emb_kernel(ids_ref, table_ref, out_ref):
    # ids_ref:   VMEM int32[block, 1]
    # table_ref: VMEM f32[V_pad, h_nf]   (whole padded table, resident across grid)
    # out_ref:   VMEM f32[block, h_nf]
    block = out_ref.shape[0]
    v_pad = table_ref.shape[0]
    one_hot = (ids_ref[...] ==
               lax.broadcasted_iota(jnp.int32, (block, v_pad), 1)
               ).astype(table_ref.dtype)
    out_ref[...] = jnp.dot(
        one_hot, table_ref[...],
        preferred_element_type=jnp.float32,
        precision=lax.Precision.HIGHEST,
    ).astype(out_ref.dtype)


def node_embedding(atomic_ns, emb_table_padded, *, block_cap=512):
    n = atomic_ns.shape[0]
    v_pad, h_nf = emb_table_padded.shape
    block = _pick_block(n, block_cap)
    n_pad = _round_up(n, block)
    ids = jnp.zeros((n_pad, 1), jnp.int32).at[:n, 0].set(atomic_ns.astype(jnp.int32))
    grid = (n_pad // block,)
    out = pl.pallas_call(
        _node_emb_kernel,
        out_shape=jax.ShapeDtypeStruct((n_pad, h_nf), emb_table_padded.dtype),
        grid_spec=pl.GridSpec(
            grid=grid,
            in_specs=[pl.BlockSpec((block, 1), lambda i: (i, 0)),
                      pl.BlockSpec((v_pad, h_nf), lambda i: (0, 0))],
            out_specs=pl.BlockSpec((block, h_nf), lambda i: (i, 0)),
        ),
        compiler_params=pltpu.CompilerParams(dimension_semantics=("parallel",)),
    )(ids, emb_table_padded)
    return out[:n]


# ---------------------------------------------------------------------------
# Kernel 2 (fused): coord gather + edge weights (distances) + GaussianSmearing
# ---------------------------------------------------------------------------
def _edge_kernel(src_ref, dst_ref, coords_ref, w_ref, emb_ref, *,
                 coeff: float, delta: float, n_gaussians: int):
    # src/dst: VMEM int32[block, 1]; coords: VMEM f32[N_pad, 128] (xyz in lanes 0..2)
    block = emb_ref.shape[0]
    n_pad = coords_ref.shape[0]
    node_iota = lax.broadcasted_iota(jnp.int32, (block, n_pad), 1)
    # Fused gather: (onehot(src) - onehot(dst)) @ coords == coords[src] - coords[dst]
    sel = ((src_ref[...] == node_iota).astype(jnp.float32)
           - (dst_ref[...] == node_iota).astype(jnp.float32))          # [block, N_pad]
    diff = jnp.dot(sel, coords_ref[...],
                   preferred_element_type=jnp.float32,
                   precision=lax.Precision.HIGHEST)                    # [block, 128]
    d = jnp.sqrt(jnp.sum(diff * diff, axis=-1, keepdims=True))         # [block, 1]
    w_ref[...] = d
    # Gaussian smearing: offsets generated in-kernel; coeff/delta are compile-time
    # Python constants baked via closure.  exp -> EUP slot.
    offs = lax.broadcasted_iota(jnp.float32, (1, n_gaussians), 1) * delta
    t = d - offs                                                       # [block, G] lane-dense
    emb_ref[...] = jnp.exp(coeff * (t * t)).astype(emb_ref.dtype)


def edge_init(src, dst, coords, *, cutoff: float, n_gaussians: int,
              emb_dtype=jnp.float32, block_cap=512):
    e = src.shape[0]
    n, c = coords.shape
    n_pad = _round_up(n, 8)
    c_pad = 128   # lane-dense RHS for the gather matmul (xyz + zero padding)
    coords_pad = jnp.zeros((n_pad, c_pad), jnp.float32)
    coords_pad = coords_pad.at[:n, :c].set(coords.astype(jnp.float32))

    block = _pick_block(e, block_cap)
    # Keep the in-kernel (block, N_pad) one-hot temporaries <= ~4 MiB.
    # TODO(synk): for very large graphs a packed (E,8) gathered-coords variant
    # would be preferable to shrinking the block this way.
    block = min(block, max(8, ((1 << 20) // n_pad) // 8 * 8))
    e_pad = _round_up(e, block)

    src_p = jnp.zeros((e_pad, 1), jnp.int32).at[:e, 0].set(src.astype(jnp.int32))
    dst_p = jnp.zeros((e_pad, 1), jnp.int32).at[:e, 0].set(dst.astype(jnp.int32))

    delta = float(cutoff) / float(n_gaussians - 1)
    coeff = -0.5 / (delta * delta)

    grid = (e_pad // block,)
    w, emb = pl.pallas_call(
        functools.partial(_edge_kernel, coeff=coeff, delta=delta,
                          n_gaussians=n_gaussians),
        out_shape=(jax.ShapeDtypeStruct((e_pad, 1), jnp.float32),
                   jax.ShapeDtypeStruct((e_pad, n_gaussians), emb_dtype)),
        grid_spec=pl.GridSpec(
            grid=grid,
            in_specs=[pl.BlockSpec((block, 1), lambda i: (i, 0)),
                      pl.BlockSpec((block, 1), lambda i: (i, 0)),
                      pl.BlockSpec((n_pad, c_pad), lambda i: (0, 0))],
            out_specs=(pl.BlockSpec((block, 1), lambda i: (i, 0)),
                       pl.BlockSpec((block, n_gaussians), lambda i: (i, 0))),
        ),
        compiler_params=pltpu.CompilerParams(dimension_semantics=("parallel",)),
    )(src_p, dst_p, coords_pad)
    return w[:e, 0], emb[:e]


# ---------------------------------------------------------------------------
# Module wrapper
# ---------------------------------------------------------------------------
class SchNetInitPallas:
    POSS_ELEMS = 100
    ORIGIN = 0.0

    def __init__(self, h_nf, cutoff_val, n_gaussians, key):
        self.h_nf = int(h_nf)
        self.cutoff = float(cutoff_val)
        self.n_gaussians = int(n_gaussians)
        # Embedding(100, h_nf) weights (torch default init ~ N(0, 1))
        self.node_emb_table = jax.random.normal(
            key, (self.POSS_ELEMS, h_nf), dtype=jnp.float32)
        # Row-pad the vocab once to 128 (one lane-width), so the in-kernel one-hot
        # is a single vreg column block; out-of-range ids select zeros (no OOB reads).
        v_pad = _round_up(self.POSS_ELEMS, 128)
        self.node_emb_table_padded = jnp.zeros((v_pad, self.h_nf), jnp.float32
                                               ).at[:self.POSS_ELEMS].set(self.node_emb_table)

    def __call__(self, atomic_ns, edge_index, coords, batch_node_vec):
        node_embs = node_embedding(atomic_ns, self.node_emb_table_padded)
        # TODO(synk): radius_graph(coords, cutoff, batch_node_vec) yields a
        # data-dependent edge count — no static-shape Pallas equivalent; the
        # provided edge_index is used instead (batch_node_vec is unused here).
        src, dst = edge_index[0], edge_index[1]
        edge_weights, edge_embs = edge_init(
            src, dst, coords, cutoff=self.cutoff, n_gaussians=self.n_gaussians)
        return node_embs, edge_embs, edge_weights


if __name__ == "__main__":
    key = jax.random.PRNGKey(0)
    k_emb, k_z, k_pos, k_src, k_dst = jax.random.split(key, 5)

    # Small SchNet-ish config (lane-dense feature dims)
    h_nf = 128
    n_gaussians = 128
    cutoff_val = 5.0
    n_nodes = 64
    n_edges = 512

    model = SchNetInitPallas(h_nf, cutoff_val, n_gaussians, k_emb)

    atomic_ns = jax.random.randint(
        k_z, (n_nodes,), 1, SchNetInitPallas.POSS_ELEMS, dtype=jnp.int32)
    coords = jax.random.uniform(
        k_pos, (n_nodes, 3), dtype=jnp.float32, minval=-3.0, maxval=3.0)
    src = jax.random.randint(k_src, (n_edges,), 0, n_nodes, dtype=jnp.int32)
    dst = jax.random.randint(k_dst, (n_edges,), 0, n_nodes, dtype=jnp.int32)
    edge_index = jnp.stack([src, dst], axis=0)
    batch_node_vec = jnp.zeros((n_nodes,), dtype=jnp.int32)

    node_embs, edge_embs, edge_weights = model(
        atomic_ns, edge_index, coords, batch_node_vec)
    node_embs, edge_embs, edge_weights = jax.block_until_ready(
        (node_embs, edge_embs, edge_weights))

    # Pure-JAX reference (mirrors the PyTorch forward, radius_graph excluded)
    node_ref = model.node_emb_table[atomic_ns]
    dvec = coords[src] - coords[dst]
    w_ref = jnp.sqrt(jnp.sum(dvec * dvec, axis=-1))
    offsets = jnp.linspace(0.0, cutoff_val, n_gaussians, dtype=jnp.float32)
    coeff = -0.5 / float(offsets[1] - offsets[0]) ** 2
    emb_ref = jnp.exp(coeff * (w_ref[:, None] - offsets[None, :]) ** 2)

    assert node_embs.shape == (n_nodes, h_nf) and node_embs.dtype == jnp.float32
    assert edge_embs.shape == (n_edges, n_gaussians)
    assert edge_weights.shape == (n_edges,)
    assert jnp.allclose(node_embs, node_ref, atol=1e-5, rtol=1e-5), "node_embs mismatch"
    assert jnp.allclose(edge_weights, w_ref, atol=1e-4, rtol=1e-4), "edge_weights mismatch"
    assert jnp.allclose(edge_embs, emb_ref, atol=1e-3, rtol=1e-3), "edge_embs mismatch"

    print("KERNEL_OK")
</pallas_src>

<mosaic_0001>
module attributes {stable_mosaic.version = 11 : i64} {
  func.func @_node_emb_kernel(%arg0: i32, %arg1: memref<64x1xi32, #tpu.memory_space<vmem>>, %arg2: memref<128x128xf32, #tpu.memory_space<vmem>>, %arg3: memref<64x128xf32, #tpu.memory_space<vmem>>) attributes {dimension_semantics = [#tpu.dimension_semantics<parallel>], iteration_bounds = array<i64: 1>, scalar_prefetch = 0 : i64, scratch_operands = 0 : i64, tpu.core_type = #tpu.core_type<tc>, window_params = [{transform_indices = @transform_0, window_bounds = array<i64: 64, 1>}, {pipeline_mode = #tpu.pipeline_mode<synchronous>, transform_indices = @transform_1, window_bounds = array<i64: 128, 128>}, {transform_indices = @transform_2, window_bounds = array<i64: 64, 128>}]} {
    %c0 = arith.constant 0 : index
    %c0_0 = arith.constant 0 : index
    %0 = vector.load %arg1[%c0, %c0_0] : memref<64x1xi32, #tpu.memory_space<vmem>>, vector<64x1xi32>
    %1 = tpu.iota {dimensions = array<i32: 1>} : vector<64x128xi32>
    %2 = vector.broadcast %0 : vector<64x1xi32> to vector<64x128xi32>
    %3 = arith.cmpi eq, %2, %1 : vector<64x128xi32>
    %4 = arith.extui %3 : vector<64x128xi1> to vector<64x128xi32>
    %5 = arith.sitofp %4 : vector<64x128xi32> to vector<64x128xf32>
    %c0_1 = arith.constant 0 : index
    %c0_2 = arith.constant 0 : index
    %6 = vector.load %arg2[%c0_1, %c0_2] : memref<128x128xf32, #tpu.memory_space<vmem>>, vector<128x128xf32>
    %cst = arith.constant dense<0.000000e+00> : vector<64x128xf32>
    %7 = tpu.matmul %5, %6, %cst {dimension_numbers = #tpu.dot_dimension_numbers<[1], [0], [0], [1], [0, 0, 1, 1], [], []>, precision = #tpu.contract_precision<fp32>} : vector<64x128xf32>, vector<128x128xf32>, vector<64x128xf32> -> vector<64x128xf32>
    %c0_3 = arith.constant 0 : index
    %c0_4 = arith.constant 0 : index
    %8 = vector.load %arg3[%c0_3, %c0_4] : memref<64x128xf32, #tpu.memory_space<vmem>>, vector<64x128xf32>
    tpu.vector_store %arg3[%c0_3, %c0_4], %7 {strides = array<i32>} : memref<64x128xf32, #tpu.memory_space<vmem>>, vector<64x128xf32>,
    return
  }
  func.func @transform_0(%arg0: i32) -> (i32, i32) {
    %c0_i32 = arith.constant 0 : i32
    %c0_i32_0 = arith.constant 0 : i32
    return %arg0, %c0_i32 : i32, i32
  }
  func.func @transform_1(%arg0: i32) -> (i32, i32) {
    %c0_i32 = arith.constant 0 : i32
    %c0_i32_0 = arith.constant 0 : i32
    %c0_i32_1 = arith.constant 0 : i32
    return %c0_i32, %c0_i32_0 : i32, i32
  }
  func.func @transform_2(%arg0: i32) -> (i32, i32) {
    %c0_i32 = arith.constant 0 : i32
    %c0_i32_0 = arith.constant 0 : i32
    return %arg0, %c0_i32 : i32, i32
  }
}

</mosaic_0001>

<llo_original>
// kernel: tpu_custom_call.1
$region0: #{tpu_custom_call.1}
  #allocation0 [shape = 'u32[]', space=smem, size = 0x4, offset = 0x4, fixed_abs, tag = 'smem constant byte address 0x4 - core index']
  #allocation1 [shape = 'u32[144,128]{1,0:T(1,128)}', space=vmem, size = 0x12000, scoped, tag = 'internal scratch']
  %s0 = inlined_call_operand.vmem [shape: s32[64,1], index: 0, kind: input, shape index: {}]
  %s1 = inlined_call_operand.hbm [shape: f32[128,128], index: 1, kind: input, shape index: {}]
  %s2 = inlined_call_operand.hbm [shape: f32[64,128], index: 2, kind: output, shape index: {}]
  %s3 = sld [smem:[#allocation0]]
  $region22: #{tpu_custom_call.1} parent=0
    _
  %s5 = ssub.s32 1, %s3
  %s6 = scalar_select 0, %s5, %s3
  $region1: #{tpu_custom_call.1} parent=0
    #allocation2 [shape = 'u8[65536]{0}', space=vmem, size = 0x10000, scoped, tag = 'input window, operand 1, single buffered']
    #allocation3 [shape = 's32[1]{0}', space=sflag, size = 0x4, scoped, tag = 'scoped memory for tpu_custom_call.1']
    #allocation4 [shape = 's32[1]{0}', space=sflag, size = 0x4, scoped, tag = 'scoped memory for tpu_custom_call.1']
    #allocation5 [shape = 'u8[32768]{0}', space=vmem, size = 0x8000, scoped, tag = 'output window, operand 0, single buffered']
    %7 = vsyncpa [#allocation3], 0
    %8 = vsyncpa [#allocation4], 0
    // Predicated region
    $region2: #{tpu_custom_call.1} parent=1 // pred_check
      _
    $region3: #{tpu_custom_call.1} parent=1 // pred_check_branch
      %10 = sbr.rel (0) target = $region5
    $region4: #{tpu_custom_call.1} parent=1 // pred_region
      _
    $region5: #{tpu_custom_call.1} parent=1 // pred_fallthru
      _
    // Predicated region
    $region6: #{tpu_custom_call.1} parent=1 // pred_check
      _
    $region7: #{tpu_custom_call.1} parent=1 // pred_check_branch
      %12 = sbr.rel (0) target = $region9
    $region8: #{tpu_custom_call.1} parent=1 // pred_region
      %s14 = ssub.s32 2048, 2048
      %15 = vsyncadd [#allocation3], %s14
      %s16 = sshll.u32 [#allocation2], 4
      %s17 = int_to_ptr.vmem [resolvable:$true] %s16
      %22 = dma.hbm_to_vmem [thread:$0]  %s1, 2048, %s17, [#allocation3], 128, 128, 8
    $region9: #{tpu_custom_call.1} parent=1 // pred_fallthru
      _
    // Predicated region
    $region10: #{tpu_custom_call.1} parent=1 // pred_check
      _
    $region11: #{tpu_custom_call.1} parent=1 // pred_check_branch
      %24 = sbr.rel (0) target = $region13
    $region12: #{tpu_custom_call.1} parent=1 // pred_region
      %25 = dma.done [#allocation3], 2048
    $region13: #{tpu_custom_call.1} parent=1 // pred_fallthru
      _
    %v26 = vld [vmem:[%s0] sm:$0xff]
    %v27 = vld [vmem:[%s0 + $0x8] sm:$0xff]
    %v28 = vld [vmem:[%s0 + $0x10] sm:$0xff]
    %v29 = vld [vmem:[%s0 + $0x18] sm:$0xff]
    %v30 = vld [vmem:[%s0 + $0x20] sm:$0xff]
    %v31 = vld [vmem:[%s0 + $0x28] sm:$0xff]
    %v32 = vld [vmem:[%s0 + $0x30] sm:$0xff]
    %v33 = vld [vmem:[%s0 + $0x38] sm:$0xff]
    %v34 = vlaneseq
    %v35 = vand.u32 %v34, 127
    %36 = vset.pattern.permute.xlu0 0
    %37 = vperm.xlu0 %36, %v26
    %v38 = vpop.permute.xlu0 %37
    %39 = vset.pattern.permute.xlu0 0
    %40 = vperm.xlu0 %39, %v27
    %v41 = vpop.permute.xlu0 %40
    %42 = vset.pattern.permute.xlu0 0
    %43 = vperm.xlu0 %42, %v28
    %v44 = vpop.permute.xlu0 %43
    %45 = vset.pattern.permute.xlu0 0
    %46 = vperm.xlu0 %45, %v29
    %v47 = vpop.permute.xlu0 %46
    %48 = vset.pattern.permute.xlu0 0
    %49 = vperm.xlu0 %48, %v30
    %v50 = vpop.permute.xlu0 %49
    %51 = vset.pattern.permute.xlu0 0
    %52 = vperm.xlu0 %51, %v31
    %v53 = vpop.permute.xlu0 %52
    %54 = vset.pattern.permute.xlu0 0
    %55 = vperm.xlu0 %54, %v32
    %v56 = vpop.permute.xlu0 %55
    %57 = vset.pattern.permute.xlu0 0
    %58 = vperm.xlu0 %57, %v33
    %v59 = vpop.permute.xlu0 %58
    %vm60 = vcmp.eq.s32.totalorder %v38, %v35
    %vm61 = vcmp.eq.s32.totalorder %v41, %v35
    %vm62 = vcmp.eq.s32.totalorder %v44, %v35
    %vm63 = vcmp.eq.s32.totalorder %v47, %v35
    %vm64 = vcmp.eq.s32.totalorder %v50, %v35
    %vm65 = vcmp.eq.s32.totalorder %v53, %v35
    %vm66 = vcmp.eq.s32.totalorder %v56, %v35
    %vm67 = vcmp.eq.s32.totalorder %v59, %v35
    %v68 = vsel %vm60, 1, 0
    %v69 = vsel %vm61, 1, 0
    %v70 = vsel %vm62, 1, 0
    %v71 = vsel %vm63, 1, 0
    %v72 = vsel %vm64, 1, 0
    %v73 = vsel %vm65, 1, 0
    %v74 = vsel %vm66, 1, 0
    %v75 = vsel %vm67, 1, 0
    %v76 = vcvt.s32.f32 %v68
    %v77 = vcvt.s32.f32 %v69
    %v78 = vcvt.s32.f32 %v70
    %v79 = vcvt.s32.f32 %v71
    %v80 = vcvt.s32.f32 %v72
    %v81 = vcvt.s32.f32 %v73
    %v82 = vcvt.s32.f32 %v74
    %v83 = vcvt.s32.f32 %v75
    %v84 = vld [vmem:[#allocation2] sm:$0xff]
    %v85 = vld [vmem:[#allocation2 + $0x8] sm:$0xff]
    %v86 = vld [vmem:[#allocation2 + $0x10] sm:$0xff]
    %v87 = vld [vmem:[#allocation2 + $0x18] sm:$0xff]
    %v88 = vld [vmem:[#allocation2 + $0x20] sm:$0xff]
    %v89 = vld [vmem:[#allocation2 + $0x28] sm:$0xff]
    %v90 = vld [vmem:[#allocation2 + $0x30] sm:$0xff]
    %v91 = vld [vmem:[#allocation2 + $0x38] sm:$0xff]
    %v92 = vld [vmem:[#allocation2 + $0x40] sm:$0xff]
    %v93 = vld [vmem:[#allocation2 + $0x48] sm:$0xff]
    %v94 = vld [vmem:[#allocation2 + $0x50] sm:$0xff]
    %v95 = vld [vmem:[#allocation2 + $0x58] sm:$0xff]
    %v96 = vld [vmem:[#allocation2 + $0x60] sm:$0xff]
    %v97 = vld [vmem:[#allocation2 + $0x68] sm:$0xff]
    %v98 = vld [vmem:[#allocation2 + $0x70] sm:$0xff]
    %v99 = vld [vmem:[#allocation2 + $0x78] sm:$0xff]
    %100 = vmatprep.subr.mxu0 0.0
    %v101 = vand.u32 %v84, 4294901760
    %102 = vmatpush1.msra.mxu0 %v101
    %103 = vmatprep.subr.mxu0 0.0
    %v104 = vand.u32 %v85, 4294901760
    %105 = vmatpush1.msra.mxu0 %v104
    %106 = vmatprep.subr.mxu0 0.0
    %v107 = vand.u32 %v86, 4294901760
    %108 = vmatpush1.msra.mxu0 %v107
    %109 = vmatprep.subr.mxu0 0.0
    %v110 = vand.u32 %v87, 4294901760
    %111 = vmatpush1.msra.mxu0 %v110
    %112 = vmatprep.subr.mxu0 0.0
    %v113 = vand.u32 %v88, 4294901760
    %114 = vmatpush1.msra.mxu0 %v113
    %115 = vmatprep.subr.mxu0 0.0
    %v116 = vand.u32 %v89, 4294901760
    %117 = vmatpush1.msra.mxu0 %v116
    %118 = vmatprep.subr.mxu0 0.0
    %v119 = vand.u32 %v90, 4294901760
    %120 = vmatpush1.msra.mxu0 %v119
    %121 = vmatprep.subr.mxu0 0.0
    %v122 = vand.u32 %v91, 4294901760
    %123 = vmatpush1.msra.mxu0 %v122
    %124 = vmatprep.subr.mxu0 0.0
    %v125 = vand.u32 %v92, 4294901760
    %126 = vmatpush1.msra.mxu0 %v125
    %127 = vmatprep.subr.mxu0 0.0
    %v128 = vand.u32 %v93, 4294901760
    %129 = vmatpush1.msra.mxu0 %v128
    %130 = vmatprep.subr.mxu0 0.0
    %v131 = vand.u32 %v94, 4294901760
    %132 = vmatpush1.msra.mxu0 %v131
    %133 = vmatprep.subr.mxu0 0.0
    %v134 = vand.u32 %v95, 4294901760
    %135 = vmatpush1.msra.mxu0 %v134
    %136 = vmatprep.subr.mxu0 0.0
    %v137 = vand.u32 %v96, 4294901760
    %138 = vmatpush1.msra.mxu0 %v137
    %139 = vmatprep.subr.mxu0 0.0
    %v140 = vand.u32 %v97, 4294901760
    %141 = vmatpush1.msra.mxu0 %v140
    %142 = vmatprep.subr.mxu0 0.0
    %v143 = vand.u32 %v98, 4294901760
    %144 = vmatpush1.msra.mxu0 %v143
    %145 = vmatprep.subr.mxu0 0.0
    %v146 = vand.u32 %v99, 4294901760
    %147 = vmatpush1.msra.mxu0 %v146
    %148 = vmatprep.subr.mxu0 0.0
    %149 = vmatpush1.msra.mxu0 0.0
    %150 = vmatprep.subr.mxu0 0.0
    %151 = vmatpush1.msra.mxu0 0.0
    %152 = vmatprep.subr.mxu0 0.0
    %153 = vmatpush1.msra.mxu0 0.0
    %154 = vmatprep.subr.mxu0 0.0
    %155 = vmatpush1.msra.mxu0 0.0
    %156 = vmatprep.subr.mxu0 0.0
    %157 = vmatpush1.msra.mxu0 0.0
    %158 = vmatprep.subr.mxu0 0.0
    %159 = vmatpush1.msra.mxu0 0.0
    %160 = vmatprep.subr.mxu0 0.0
    %161 = vmatpush1.msra.mxu0 0.0
    %162 = vmatprep.subr.mxu0 0.0
    %163 = vmatpush1.msra.mxu0 0.0
    %164 = vmatprep.subr.mxu0 0.0
    %165 = vmatpush1.msra.mxu0 0.0
    %166 = vmatprep.subr.mxu0 0.0
    %167 = vmatpush1.msra.mxu0 0.0
    %168 = vmatprep.subr.mxu0 0.0
    %169 = vmatpush1.msra.mxu0 0.0
    %170 = vmatprep.subr.mxu0 0.0
    %171 = vmatpush1.msra.mxu0 0.0
    %172 = vmatprep.subr.mxu0 0.0
    %173 = vmatpush1.msra.mxu0 0.0
    %174 = vmatprep.subr.mxu0 0.0
    %175 = vmatpush1.msra.mxu0 0.0
    %176 = vmatprep.subr.mxu0 0.0
    %177 = vmatpush1.msra.mxu0 0.0
    %178 = vmatprep.subr.mxu0 0.0
    %179 = vmatpush1.msra.mxu0 0.0
    %180 = vmatprep.mubr.f32.mxu0 0.0
    %v181 = vand.u32 %v76, 4294901760
    %v182 = vsub.f32 %v76, %v181
    %v183 = vand.u32 %v182, 4294901760
    %v184 = vsub.f32 %v182, %v183
    %v185 = vand.u32 %v184, 4294901760
    %186 = vmatmul.mubr.f32.gmra.mrb[0].mxu0 %v185
    %v187 = vpop.f32.mrb[0].mxu0
    %v188 = vadd.f32 0.0, %v187
    %v189 = vpop.f32.mrb[0].mxu0
    %190 = vmatprep.mubr.f32.mxu0 0.0
    %v191 = vand.u32 %v77, 4294901760
    %v192 = vsub.f32 %v77, %v191
    %v193 = vand.u32 %v192, 4294901760
    %v194 = vsub.f32 %v192, %v193
    %v195 = vand.u32 %v194, 4294901760
    %196 = vmatmul.mubr.f32.gmra.mrb[0].mxu0 %v195
    %v197 = vpop.f32.mrb[0].mxu0
    %v198 = vadd.f32 0.0, %v197
    %v199 = vpop.f32.mrb[0].mxu0
    %200 = vmatprep.mubr.f32.mxu0 0.0
    %v201 = vand.u32 %v78, 4294901760
    %v202 = vsub.f32 %v78, %v201
    %v203 = vand.u32 %v202, 4294901760
    %v204 = vsub.f32 %v202, %v203
    %v205 = vand.u32 %v204, 4294901760
    %206 = vmatmul.mubr.f32.gmra.mrb[0].mxu0 %v205
    %v207 = vpop.f32.mrb[0].mxu0
    %v208 = vadd.f32 0.0, %v207
    %v209 = vpop.f32.mrb[0].mxu0
    %210 = vmatprep.mubr.f32.mxu0 0.0
    %v211 = vand.u32 %v79, 4294901760
    %v212 = vsub.f32 %v79, %v211
    %v213 = vand.u32 %v212, 4294901760
    %v214 = vsub.f32 %v212, %v213
    %v215 = vand.u32 %v214, 4294901760
    %216 = vmatmul.mubr.f32.gmra.mrb[0].mxu0 %v215
    %v217 = vpop.f32.mrb[0].mxu0
    %v218 = vadd.f32 0.0, %v217
    %v219 = vpop.f32.mrb[0].mxu0
    %220 = vmatprep.mubr.f32.mxu0 0.0
    %v221 = vand.u32 %v80, 4294901760
    %v222 = vsub.f32 %v80, %v221
    %v223 = vand.u32 %v222, 4294901760
    %v224 = vsub.f32 %v222, %v223
    %v225 = vand.u32 %v224, 4294901760
    %226 = vmatmul.mubr.f32.gmra.mrb[0].mxu0 %v225
    %v227 = vpop.f32.mrb[0].mxu0
    %v228 = vadd.f32 0.0, %v227
    %v229 = vpop.f32.mrb[0].mxu0
    %230 = vmatprep.mubr.f32.mxu0 0.0
    %v231 = vand.u32 %v81, 4294901760
    %v232 = vsub.f32 %v81, %v231
    %v233 = vand.u32 %v232, 4294901760
    %v234 = vsub.f32 %v232, %v233
    %v235 = vand.u32 %v234, 4294901760
    %236 = vmatmul.mubr.f32.gmra.mrb[0].mxu0 %v235
    %v237 = vpop.f32.mrb[0].mxu0
    %v238 = vadd.f32 0.0, %v237
    %v239 = vpop.f32.mrb[0].mxu0
    %240 = vmatprep.mubr.f32.mxu0 0.0
    %v241 = vand.u32 %v82, 4294901760
    %v242 = vsub.f32 %v82, %v241
    %v243 = vand.u32 %v242, 4294901760
    %v244 = vsub.f32 %v242, %v243
    %v245 = vand.u32 %v244, 4294901760
    %246 = vmatmul.mubr.f32.gmra.mrb[0].mxu0 %v245
    %v247 = vpop.f32.mrb[0].mxu0
    %v248 = vadd.f32 0.0, %v247
    %v249 = vpop.f32.mrb[0].mxu0
    %250 = vmatprep.mubr.f32.mxu0 0.0
    %v251 = vand.u32 %v83, 4294901760
    %v252 = vsub.f32 %v83, %v251
    %v253 = vand.u32 %v252, 4294901760
    %v254 = vsub.f32 %v252, %v253
    %v255 = vand.u32 %v254, 4294901760
    %256 = vmatmul.mubr.f32.gmra.mrb[0].mxu0 %v255
    %v257 = vpop.f32.mrb[0].mxu0
    %v258 = vadd.f32 0.0, %v257
    %v259 = vpop.f32.mrb[0].mxu0
    %260 = vdwg.mxu0
    %261 = vmatprep.subr.mxu0 0.0
    %v262 = vand.u32 %v84, 4294901760
    %v263 = vsub.f32 %v84, %v262
    %v264 = vand.u32 %v263, 4294901760
    %v265 = vsub.f32 %v263, %v264
    %v266 = vand.u32 %v265, 4294901760
    %267 = vmatpush1.msra.mxu0 %v266
    %268 = vmatprep.subr.mxu0 0.0
    %v269 = vand.u32 %v85, 4294901760
    %v270 = vsub.f32 %v85, %v269
    %v271 = vand.u32 %v270, 4294901760
    %v272 = vsub.f32 %v270, %v271
    %v273 = vand.u32 %v272, 4294901760
    %274 = vmatpush1.msra.mxu0 %v273
    %275 = vmatprep.subr.mxu0 0.0
    %v276 = vand.u32 %v86, 4294901760
    %v277 = vsub.f32 %v86, %v276
    %v278 = vand.u32 %v277, 4294901760
    %v279 = vsub.f32 %v277, %v278
    %v280 = vand.u32 %v279, 4294901760
    %281 = vmatpush1.msra.mxu0 %v280
    %282 = vmatprep.subr.mxu0 0.0
    %v283 = vand.u32 %v87, 4294901760
    %v284 = vsub.f32 %v87, %v283
    %v285 = vand.u32 %v284, 4294901760
    %v286 = vsub.f32 %v284, %v285
    %v287 = vand.u32 %v286, 4294901760
    %288 = vmatpush1.msra.mxu0 %v287
    %289 = vmatprep.subr.mxu0 0.0
    %v290 = vand.u32 %v88, 4294901760
    %v291 = vsub.f32 %v88, %v290
    %v292 = vand.u32 %v291, 4294901760
    %v293 = vsub.f32 %v291, %v292
    %v294 = vand.u32 %v293, 4294901760
    %295 = vmatpush1.msra.mxu0 %v294
    %296 = vmatprep.subr.mxu0 0.0
    %v297 = vand.u32 %v89, 4294901760
    %v298 = vsub.f32 %v89, %v297
    %v299 = vand.u32 %v298, 4294901760
    %v300 = vsub.f32 %v298, %v299
    %v301 = vand.u32 %v300, 4294901760
    %302 = vmatpush1.msra.mxu0 %v301
    %303 = vmatprep.subr.mxu0 0.0
    %v304 = vand.u32 %v90, 4294901760
    %v305 = vsub.f32 %v90, %v304
    %v306 = vand.u32 %v305, 4294901760
    %v307 = vsub.f32 %v305, %v306
    %v308 = vand.u32 %v307, 4294901760
    %309 = vmatpush1.msra.mxu0 %v308
    %310 = vmatprep.subr.mxu0 0.0
    %v311 = vand.u32 %v91, 4294901760
    %v312 = vsub.f32 %v91, %v311
    %v313 = vand.u32 %v312, 4294901760
    %v314 = vsub.f32 %v312, %v313
    %v315 = vand.u32 %v314, 4294901760
    %316 = vmatpush1.msra.mxu0 %v315
    %317 = vmatprep.subr.mxu0 0.0
    %v318 = vand.u32 %v92, 4294901760
    %v319 = vsub.f32 %v92, %v318
    %v320 = vand.u32 %v319, 4294901760
    %v321 = vsub.f32 %v319, %v320
    %v322 = vand.u32 %v321, 4294901760
    %323 = vmatpush1.msra.mxu0 %v322
    %324 = vmatprep.subr.mxu0 0.0
    %v325 = vand.u32 %v93, 4294901760
    %v326 = vsub.f32 %v93, %v325
    %v327 = vand.u32 %v326, 4294901760
    %v328 = vsub.f32 %v326, %v327
    %v329 = vand.u32 %v328, 4294901760
    %330 = vmatpush1.msra.mxu0 %v329
    %331 = vmatprep.subr.mxu0 0.0
    %v332 = vand.u32 %v94, 4294901760
    %v333 = vsub.f32 %v94, %v332
    %v334 = vand.u32 %v333, 4294901760
    %v335 = vsub.f32 %v333, %v334
    %v336 = vand.u32 %v335, 4294901760
    %337 = vmatpush1.msra.mxu0 %v336
    %338 = vmatprep.subr.mxu0 0.0
    %v339 = vand.u32 %v95, 4294901760
    %v340 = vsub.f32 %v95, %v339
    %v341 = vand.u32 %v340, 4294901760
    %v342 = vsub.f32 %v340, %v341
    %v343 = vand.u32 %v342, 4294901760
    %344 = vmatpush1.msra.mxu0 %v343
    %345 = vmatprep.subr.mxu0 0.0
    %v346 = vand.u32 %v96, 4294901760
    %v347 = vsub.f32 %v96, %v346
    %v348 = vand.u32 %v347, 4294901760
    %v349 = vsub.f32 %v347, %v348
    %v350 = vand.u32 %v349, 4294901760
    %351 = vmatpush1.msra.mxu0 %v350
    %352 = vmatprep.subr.mxu0 0.0
    %v353 = vand.u32 %v97, 4294901760
    %v354 = vsub.f32 %v97, %v353
    %v355 = vand.u32 %v354, 4294901760
    %v356 = vsub.f32 %v354, %v355
    %v357 = vand.u32 %v356, 4294901760
    %358 = vmatpush1.msra.mxu0 %v357
    %359 = vmatprep.subr.mxu0 0.0
    %v360 = vand.u32 %v98, 4294901760
    %v361 = vsub.f32 %v98, %v360
    %v362 = vand.u32 %v361, 4294901760
    %v363 = vsub.f32 %v361, %v362
    %v364 = vand.u32 %v363, 4294901760
    %365 = vmatpush1.msra.mxu0 %v364
    %366 = vmatprep.subr.mxu0 0.0
    %v367 = vand.u32 %v99, 4294901760
    %v368 = vsub.f32 %v99, %v367
    %v369 = vand.u32 %v368, 4294901760
    %v370 = vsub.f32 %v368, %v369
    %v371 = vand.u32 %v370, 4294901760
    %372 = vmatpush1.msra.mxu0 %v371
    %373 = vmatprep.subr.mxu0 0.0
    %374 = vmatpush1.msra.mxu0 0.0
    %375 = vmatprep.subr.mxu0 0.0
    %376 = vmatpush1.msra.mxu0 0.0
    %377 = vmatprep.subr.mxu0 0.0
    %378 = vmatpush1.msra.mxu0 0.0
    %379 = vmatprep.subr.mxu0 0.0
    %380 = vmatpush1.msra.mxu0 0.0
    %381 = vmatprep.subr.mxu0 0.0
    %382 = vmatpush1.msra.mxu0 0.0
    %383 = vmatprep.subr.mxu0 0.0
    %384 = vmatpush1.msra.mxu0 0.0
    %385 = vmatprep.subr.mxu0 0.0
    %386 = vmatpush1.msra.mxu0 0.0
    %387 = vmatprep.subr.mxu0 0.0
    %388 = vmatpush1.msra.mxu0 0.0
    %389 = vmatprep.subr.mxu0 0.0
    %390 = vmatpush1.msra.mxu0 0.0
    %391 = vmatprep.subr.mxu0 0.0
    %392 = vmatpush1.msra.mxu0 0.0
    %393 = vmatprep.subr.mxu0 0.0
    %394 = vmatpush1.msra.mxu0 0.0
    %395 = vmatprep.subr.mxu0 0.0
    %396 = vmatpush1.msra.mxu0 0.0
    %397 = vmatprep.subr.mxu0 0.0
    %398 = vmatpush1.msra.mxu0 0.0
    %399 = vmatprep.subr.mxu0 0.0
    %400 = vmatpush1.msra.mxu0 0.0
    %401 = vmatprep.subr.mxu0 0.0
    %402 = vmatpush1.msra.mxu0 0.0
    %403 = vmatprep.subr.mxu0 0.0
    %404 = vmatpush1.msra.mxu0 0.0
    %405 = vmatprep.mubr.f32.mxu0 0.0
    %v406 = vand.u32 %v76, 4294901760
    %407 = vmatmul.mubr.f32.gmra.mrb[0].mxu0 %v406
    %v408 = vpop.f32.mrb[0].mxu0
    %v409 = vadd.f32 %v188, %v408
    %v410 = vpop.f32.mrb[0].mxu0
    %411 = vmatprep.mubr.f32.mxu0 0.0
    %v412 = vand.u32 %v77, 4294901760
    %413 = vmatmul.mubr.f32.gmra.mrb[0].mxu0 %v412
    %v414 = vpop.f32.mrb[0].mxu0
    %v415 = vadd.f32 %v198, %v414
    %v416 = vpop.f32.mrb[0].mxu0
    %417 = vmatprep.mubr.f32.mxu0 0.0
    %v418 = vand.u32 %v78, 4294901760
    %419 = vmatmul.mubr.f32.gmra.mrb[0].mxu0 %v418
    %v420 = vpop.f32.mrb[0].mxu0
    %v421 = vadd.f32 %v208, %v420
    %v422 = vpop.f32.mrb[0].mxu0
    %423 = vmatprep.mubr.f32.mxu0 0.0
    %v424 = vand.u32 %v79, 4294901760
    %425 = vmatmul.mubr.f32.gmra.mrb[0].mxu0 %v424
    %v426 = vpop.f32.mrb[0].mxu0
    %v427 = vadd.f32 %v218, %v426
    %v428 = vpop.f32.mrb[0].mxu0
    %429 = vmatprep.mubr.f32.mxu0 0.0
    %v430 = vand.u32 %v80, 4294901760
    %431 = vmatmul.mubr.f32.gmra.mrb[0].mxu0 %v430
    %v432 = vpop.f32.mrb[0].mxu0
    %v433 = vadd.f32 %v228, %v432
    %v434 = vpop.f32.mrb[0].mxu0
    %435 = vmatprep.mubr.f32.mxu0 0.0
    %v436 = vand.u32 %v81, 4294901760
    %437 = vmatmul.mubr.f32.gmra.mrb[0].mxu0 %v436
    %v438 = vpop.f32.mrb[0].mxu0
    %v439 = vadd.f32 %v238, %v438
    %v440 = vpop.f32.mrb[0].mxu0
    %441 = vmatprep.mubr.f32.mxu0 0.0
    %v442 = vand.u32 %v82, 4294901760
    %443 = vmatmul.mubr.f32.gmra.mrb[0].mxu0 %v442
    %v444 = vpop.f32.mrb[0].mxu0
    %v445 = vadd.f32 %v248, %v444
    %v446 = vpop.f32.mrb[0].mxu0
    %447 = vmatprep.mubr.f32.mxu0 0.0
    %v448 = vand.u32 %v83, 4294901760
    %449 = vmatmul.mubr.f32.gmra.mrb[0].mxu0 %v448
    %v450 = vpop.f32.mrb[0].mxu0
    %v451 = vadd.f32 %v258, %v450
    %v452 = vpop.f32.mrb[0].mxu0
    %453 = vdwg.mxu0
    %454 = vmatprep.subr.mxu0 0.0
    %v455 = vand.u32 %v84, 4294901760
    %v456 = vsub.f32 %v84, %v455
    %457 = vmatpush1.msra.mxu0 %v456
    %458 = vmatprep.subr.mxu0 0.0
    %v459 = vand.u32 %v85, 4294901760
    %v460 = vsub.f32 %v85, %v459
    %461 = vmatpush1.msra.mxu0 %v460
    %462 = vmatprep.subr.mxu0 0.0
    %v463 = vand.u32 %v86, 4294901760
    %v464 = vsub.f32 %v86, %v463
    %465 = vmatpush1.msra.mxu0 %v464
    %466 = vmatprep.subr.mxu0 0.0
    %v467 = vand.u32 %v87, 4294901760
    %v468 = vsub.f32 %v87, %v467
    %469 = vmatpush1.msra.mxu0 %v468
    %470 = vmatprep.subr.mxu0 0.0
    %v471 = vand.u32 %v88, 4294901760
    %v472 = vsub.f32 %v88, %v471
    %473 = vmatpush1.msra.mxu0 %v472
    %474 = vmatprep.subr.mxu0 0.0
    %v475 = vand.u32 %v89, 4294901760
    %v476 = vsub.f32 %v89, %v475
    %477 = vmatpush1.msra.mxu0 %v476
    %478 = vmatprep.subr.mxu0 0.0
    %v479 = vand.u32 %v90, 4294901760
    %v480 = vsub.f32 %v90, %v479
    %481 = vmatpush1.msra.mxu0 %v480
    %482 = vmatprep.subr.mxu0 0.0
    %v483 = vand.u32 %v91, 4294901760
    %v484 = vsub.f32 %v91, %v483
    %485 = vmatpush1.msra.mxu0 %v484
    %486 = vmatprep.subr.mxu0 0.0
    %v487 = vand.u32 %v92, 4294901760
    %v488 = vsub.f32 %v92, %v487
    %489 = vmatpush1.msra.mxu0 %v488
    %490 = vmatprep.subr.mxu0 0.0
    %v491 = vand.u32 %v93, 4294901760
    %v492 = vsub.f32 %v93, %v491
    %493 = vmatpush1.msra.mxu0 %v492
    %494 = vmatprep.subr.mxu0 0.0
    %v495 = vand.u32 %v94, 4294901760
    %v496 = vsub.f32 %v94, %v495
    %497 = vmatpush1.msra.mxu0 %v496
    %498 = vmatprep.subr.mxu0 0.0
    %v499 = vand.u32 %v95, 4294901760
    %v500 = vsub.f32 %v95, %v499
    %501 = vmatpush1.msra.mxu0 %v500
    %502 = vmatprep.subr.mxu0 0.0
    %v503 = vand.u32 %v96, 4294901760
    %v504 = vsub.f32 %v96, %v503
    %505 = vmatpush1.msra.mxu0 %v504
    %506 = vmatprep.subr.mxu0 0.0
    %v507 = vand.u32 %v97, 4294901760
    %v508 = vsub.f32 %v97, %v507
    %509 = vmatpush1.msra.mxu0 %v508
    %510 = vmatprep.subr.mxu0 0.0
    %v511 = vand.u32 %v98, 4294901760
    %v512 = vsub.f32 %v98, %v511
    %513 = vmatpush1.msra.mxu0 %v512
    %514 = vmatprep.subr.mxu0 0.0
    %v515 = vand.u32 %v99, 4294901760
    %v516 = vsub.f32 %v99, %v515
    %517 = vmatpush1.msra.mxu0 %v516
    %518 = vmatprep.subr.mxu0 0.0
    %519 = vmatpush1.msra.mxu0 0.0
    %520 = vmatprep.subr.mxu0 0.0
    %521 = vmatpush1.msra.mxu0 0.0
    %522 = vmatprep.subr.mxu0 0.0
    %523 = vmatpush1.msra.mxu0 0.0
    %524 = vmatprep.subr.mxu0 0.0
    %525 = vmatpush1.msra.mxu0 0.0
    %526 = vmatprep.subr.mxu0 0.0
    %527 = vmatpush1.msra.mxu0 0.0
    %528 = vmatprep.subr.mxu0 0.0
    %529 = vmatpush1.msra.mxu0 0.0
    %530 = vmatprep.subr.mxu0 0.0
    %531 = vmatpush1.msra.mxu0 0.0
    %532 = vmatprep.subr.mxu0 0.0
    %533 = vmatpush1.msra.mxu0 0.0
    %534 = vmatprep.subr.mxu0 0.0
    %535 = vmatpush1.msra.mxu0 0.0
    %536 = vmatprep.subr.mxu0 0.0
    %537 = vmatpush1.msra.mxu0 0.0
    %538 = vmatprep.subr.mxu0 0.0
    %539 = vmatpush1.msra.mxu0 0.0
    %540 = vmatprep.subr.mxu0 0.0
    %541 = vmatpush1.msra.mxu0 0.0
    %542 = vmatprep.subr.mxu0 0.0
    %543 = vmatpush1.msra.mxu0 0.0
    %544 = vmatprep.subr.mxu0 0.0
    %545 = vmatpush1.msra.mxu0 0.0
    %546 = vmatprep.subr.mxu0 0.0
    %547 = vmatpush1.msra.mxu0 0.0
    %548 = vmatprep.subr.mxu0 0.0
    %549 = vmatpush1.msra.mxu0 0.0
    %550 = vmatprep.mubr.f32.mxu0 0.0
    %v551 = vand.u32 %v76, 4294901760
    %v552 = vsub.f32 %v76, %v551
    %553 = vmatmul.mubr.f32.gmra.mrb[0].mxu0 %v552
    %v554 = vpop.f32.mrb[0].mxu0
    %v555 = vadd.f32 %v409, %v554
    %v556 = vpop.f32.mrb[0].mxu0
    %557 = vmatprep.mubr.f32.mxu0 0.0
    %v558 = vand.u32 %v77, 4294901760
    %v559 = vsub.f32 %v77, %v558
    %560 = vmatmul.mubr.f32.gmra.mrb[0].mxu0 %v559
    %v561 = vpop.f32.mrb[0].mxu0
    %v562 = vadd.f32 %v415, %v561
    %v563 = vpop.f32.mrb[0].mxu0
    %564 = vmatprep.mubr.f32.mxu0 0.0
    %v565 = vand.u32 %v78, 4294901760
    %v566 = vsub.f32 %v78, %v565
    %567 = vmatmul.mubr.f32.gmra.mrb[0].mxu0 %v566
    %v568 = vpop.f32.mrb[0].mxu0
    %v569 = vadd.f32 %v421, %v568
    %v570 = vpop.f32.mrb[0].mxu0
    %571 = vmatprep.mubr.f32.mxu0 0.0
    %v572 = vand.u32 %v79, 4294901760
    %v573 = vsub.f32 %v79, %v572
    %574 = vmatmul.mubr.f32.gmra.mrb[0].mxu0 %v573
    %v575 = vpop.f32.mrb[0].mxu0
    %v576 = vadd.f32 %v427, %v575
    %v577 = vpop.f32.mrb[0].mxu0
    %578 = vmatprep.mubr.f32.mxu0 0.0
    %v579 = vand.u32 %v80, 4294901760
    %v580 = vsub.f32 %v80, %v579
    %581 = vmatmul.mubr.f32.gmra.mrb[0].mxu0 %v580
    %v582 = vpop.f32.mrb[0].mxu0
    %v583 = vadd.f32 %v433, %v582
    %v584 = vpop.f32.mrb[0].mxu0
    %585 = vmatprep.mubr.f32.mxu0 0.0
    %v586 = vand.u32 %v81, 4294901760
    %v587 = vsub.f32 %v81, %v586
    %588 = vmatmul.mubr.f32.gmra.mrb[0].mxu0 %v587
    %v589 = vpop.f32.mrb[0].mxu0
    %v590 = vadd.f32 %v439, %v589
    %v591 = vpop.f32.mrb[0].mxu0
    %592 = vmatprep.mubr.f32.mxu0 0.0
    %v593 = vand.u32 %v82, 4294901760
    %v594 = vsub.f32 %v82, %v593
    %595 = vmatmul.mubr.f32.gmra.mrb[0].mxu0 %v594
    %v596 = vpop.f32.mrb[0].mxu0
    %v597 = vadd.f32 %v445, %v596
    %v598 = vpop.f32.mrb[0].mxu0
    %599 = vmatprep.mubr.f32.mxu0 0.0
    %v600 = vand.u32 %v83, 4294901760
    %v601 = vsub.f32 %v83, %v600
    %602 = vmatmul.mubr.f32.gmra.mrb[0].mxu0 %v601
    %v603 = vpop.f32.mrb[0].mxu0
    %v604 = vadd.f32 %v451, %v603
    %v605 = vpop.f32.mrb[0].mxu0
    %606 = vdwg.mxu0
    %607 = vmatprep.subr.mxu0 0.0
    %v608 = vand.u32 %v84, 4294901760
    %609 = vmatpush1.msra.mxu0 %v608
    %610 = vmatprep.subr.mxu0 0.0
    %v611 = vand.u32 %v85, 4294901760
    %612 = vmatpush1.msra.mxu0 %v611
    %613 = vmatprep.subr.mxu0 0.0
    %v614 = vand.u32 %v86, 4294901760
    %615 = vmatpush1.msra.mxu0 %v614
    %616 = vmatprep.subr.mxu0 0.0
    %v617 = vand.u32 %v87, 4294901760
    %618 = vmatpush1.msra.mxu0 %v617
    %619 = vmatprep.subr.mxu0 0.0
    %v620 = vand.u32 %v88, 4294901760
    %621 = vmatpush1.msra.mxu0 %v620
    %622 = vmatprep.subr.mxu0 0.0
    %v623 = vand.u32 %v89, 4294901760
    %624 = vmatpush1.msra.mxu0 %v623
    %625 = vmatprep.subr.mxu0 0.0
    %v626 = vand.u32 %v90, 4294901760
    %627 = vmatpush1.msra.mxu0 %v626
    %628 = vmatprep.subr.mxu0 0.0
    %v629 = vand.u32 %v91, 4294901760
    %630 = vmatpush1.msra.mxu0 %v629
    %631 = vmatprep.subr.mxu0 0.0
    %v632 = vand.u32 %v92, 4294901760
    %633 = vmatpush1.msra.mxu0 %v632
    %634 = vmatprep.subr.mxu0 0.0
    %v635 = vand.u32 %v93, 4294901760
    %636 = vmatpush1.msra.mxu0 %v635
    %637 = vmatprep.subr.mxu0 0.0
    %v638 = vand.u32 %v94, 4294901760
    %639 = vmatpush1.msra.mxu0 %v638
    %640 = vmatprep.subr.mxu0 0.0
    %v641 = vand.u32 %v95, 4294901760
    %642 = vmatpush1.msra.mxu0 %v641
    %643 = vmatprep.subr.mxu0 0.0
    %v644 = vand.u32 %v96, 4294901760
    %645 = vmatpush1.msra.mxu0 %v644
    %646 = vmatprep.subr.mxu0 0.0
    %v647 = vand.u32 %v97, 4294901760
    %648 = vmatpush1.msra.mxu0 %v647
    %649 = vmatprep.subr.mxu0 0.0
    %v650 = vand.u32 %v98, 4294901760
    %651 = vmatpush1.msra.mxu0 %v650
    %652 = vmatprep.subr.mxu0 0.0
    %v653 = vand.u32 %v99, 4294901760
    %654 = vmatpush1.msra.mxu0 %v653
    %655 = vmatprep.subr.mxu0 0.0
    %656 = vmatpush1.msra.mxu0 0.0
    %657 = vmatprep.subr.mxu0 0.0
    %658 = vmatpush1.msra.mxu0 0.0
    %659 = vmatprep.subr.mxu0 0.0
    %660 = vmatpush1.msra.mxu0 0.0
    %661 = vmatprep.subr.mxu0 0.0
    %662 = vmatpush1.msra.mxu0 0.0
    %663 = vmatprep.subr.mxu0 0.0
    %664 = vmatpush1.msra.mxu0 0.0
    %665 = vmatprep.subr.mxu0 0.0
    %666 = vmatpush1.msra.mxu0 0.0
    %667 = vmatprep.subr.mxu0 0.0
    %668 = vmatpush1.msra.mxu0 0.0
    %669 = vmatprep.subr.mxu0 0.0
    %670 = vmatpush1.msra.mxu0 0.0
    %671 = vmatprep.subr.mxu0 0.0
    %672 = vmatpush1.msra.mxu0 0.0
    %673 = vmatprep.subr.mxu0 0.0
    %674 = vmatpush1.msra.mxu0 0.0
    %675 = vmatprep.subr.mxu0 0.0
    %676 = vmatpush1.msra.mxu0 0.0
    %677 = vmatprep.subr.mxu0 0.0
    %678 = vmatpush1.msra.mxu0 0.0
    %679 = vmatprep.subr.mxu0 0.0
    %680 = vmatpush1.msra.mxu0 0.0
    %681 = vmatprep.subr.mxu0 0.0
    %682 = vmatpush1.msra.mxu0 0.0
    %683 = vmatprep.subr.mxu0 0.0
    %684 = vmatpush1.msra.mxu0 0.0
    %685 = vmatprep.subr.mxu0 0.0
    %686 = vmatpush1.msra.mxu0 0.0
    %687 = vmatprep.mubr.f32.mxu0 0.0
    %v688 = vand.u32 %v76, 4294901760
    %v689 = vsub.f32 %v76, %v688
    %v690 = vand.u32 %v689, 4294901760
    %691 = vmatmul.mubr.f32.gmra.mrb[0].mxu0 %v690
    %v692 = vpop.f32.mrb[0].mxu0
    %v693 = vadd.f32 %v555, %v692
    %v694 = vpop.f32.mrb[0].mxu0
    %695 = vmatprep.mubr.f32.mxu0 0.0
    %v696 = vand.u32 %v77, 4294901760
    %v697 = vsub.f32 %v77, %v696
    %v698 = vand.u32 %v697, 4294901760
    %699 = vmatmul.mubr.f32.gmra.mrb[0].mxu0 %v698
    %v700 = vpop.f32.mrb[0].mxu0
    %v701 = vadd.f32 %v562, %v700
    %v702 = vpop.f32.mrb[0].mxu0
    %703 = vmatprep.mubr.f32.mxu0 0.0
    %v704 = vand.u32 %v78, 4294901760
    %v705 = vsub.f32 %v78, %v704
    %v706 = vand.u32 %v705, 4294901760
    %707 = vmatmul.mubr.f32.gmra.mrb[0].mxu0 %v706
    %v708 = vpop.f32.mrb[0].mxu0
    %v709 = vadd.f32 %v569, %v708
    %v710 = vpop.f32.mrb[0].mxu0
    %711 = vmatprep.mubr.f32.mxu0 0.0
    %v712 = vand.u32 %v79, 4294901760
    %v713 = vsub.f32 %v79, %v712
    %v714 = vand.u32 %v713, 4294901760
    %715 = vmatmul.mubr.f32.gmra.mrb[0].mxu0 %v714
    %v716 = vpop.f32.mrb[0].mxu0
    %v717 = vadd.f32 %v576, %v716
    %v718 = vpop.f32.mrb[0].mxu0
    %719 = vmatprep.mubr.f32.mxu0 0.0
    %v720 = vand.u32 %v80, 4294901760
    %v721 = vsub.f32 %v80, %v720
    %v722 = vand.u32 %v721, 4294901760
    %723 = vmatmul.mubr.f32.gmra.mrb[0].mxu0 %v722
    %v724 = vpop.f32.mrb[0].mxu0
    %v725 = vadd.f32 %v583, %v724
    %v726 = vpop.f32.mrb[0].mxu0
    %727 = vmatprep.mubr.f32.mxu0 0.0
    %v728 = vand.u32 %v81, 4294901760
    %v729 = vsub.f32 %v81, %v728
    %v730 = vand.u32 %v729, 4294901760
    %731 = vmatmul.mubr.f32.gmra.mrb[0].mxu0 %v730
    %v732 = vpop.f32.mrb[0].mxu0
    %v733 = vadd.f32 %v590, %v732
    %v734 = vpop.f32.mrb[0].mxu0
    %735 = vmatprep.mubr.f32.mxu0 0.0
    %v736 = vand.u32 %v82, 4294901760
    %v737 = vsub.f32 %v82, %v736
    %v738 = vand.u32 %v737, 4294901760
    %739 = vmatmul.mubr.f32.gmra.mrb[0].mxu0 %v738
    %v740 = vpop.f32.mrb[0].mxu0
    %v741 = vadd.f32 %v597, %v740
    %v742 = vpop.f32.mrb[0].mxu0
    %743 = vmatprep.mubr.f32.mxu0 0.0
    %v744 = vand.u32 %v83, 4294901760
    %v745 = vsub.f32 %v83, %v744
    %v746 = vand.u32 %v745, 4294901760
    %747 = vmatmul.mubr.f32.gmra.mrb[0].mxu0 %v746
    %v748 = vpop.f32.mrb[0].mxu0
    %v749 = vadd.f32 %v604, %v748
    %v750 = vpop.f32.mrb[0].mxu0
    %751 = vdwg.mxu0
    %752 = vmatprep.subr.mxu0 0.0
    %v753 = vand.u32 %v84, 4294901760
    %v754 = vsub.f32 %v84, %v753
    %v755 = vand.u32 %v754, 4294901760
    %756 = vmatpush1.msra.mxu0 %v755
    %757 = vmatprep.subr.mxu0 0.0
    %v758 = vand.u32 %v85, 4294901760
    %v759 = vsub.f32 %v85, %v758
    %v760 = vand.u32 %v759, 4294901760
    %761 = vmatpush1.msra.mxu0 %v760
    %762 = vmatprep.subr.mxu0 0.0
    %v763 = vand.u32 %v86, 4294901760
    %v764 = vsub.f32 %v86, %v763
    %v765 = vand.u32 %v764, 4294901760
    %766 = vmatpush1.msra.mxu0 %v765
    %767 = vmatprep.subr.mxu0 0.0
    %v768 = vand.u32 %v87, 4294901760
    %v769 = vsub.f32 %v87, %v768
    %v770 = vand.u32 %v769, 4294901760
    %771 = vmatpush1.msra.mxu0 %v770
    %772 = vmatprep.subr.mxu0 0.0
    %v773 = vand.u32 %v88, 4294901760
    %v774 = vsub.f32 %v88, %v773
    %v775 = vand.u32 %v774, 4294901760
    %776 = vmatpush1.msra.mxu0 %v775
    %777 = vmatprep.subr.mxu0 0.0
    %v778 = vand.u32 %v89, 4294901760
    %v779 = vsub.f32 %v89, %v778
    %v780 = vand.u32 %v779, 4294901760
    %781 = vmatpush1.msra.mxu0 %v780
    %782 = vmatprep.subr.mxu0 0.0
    %v783 = vand.u32 %v90, 4294901760
    %v784 = vsub.f32 %v90, %v783
    %v785 = vand.u32 %v784, 4294901760
    %786 = vmatpush1.msra.mxu0 %v785
    %787 = vmatprep.subr.mxu0 0.0
    %v788 = vand.u32 %v91, 4294901760
    %v789 = vsub.f32 %v91, %v788
    %v790 = vand.u32 %v789, 4294901760
    %791 = vmatpush1.msra.mxu0 %v790
    %792 = vmatprep.subr.mxu0 0.0
    %v793 = vand.u32 %v92, 4294901760
    %v794 = vsub.f32 %v92, %v793
    %v795 = vand.u32 %v794, 4294901760
    %796 = vmatpush1.msra.mxu0 %v795
    %797 = vmatprep.subr.mxu0 0.0
    %v798 = vand.u32 %v93, 4294901760
    %v799 = vsub.f32 %v93, %v798
    %v800 = vand.u32 %v799, 4294901760
    %801 = vmatpush1.msra.mxu0 %v800
    %802 = vmatprep.subr.mxu0 0.0
    %v803 = vand.u32 %v94, 4294901760
    %v804 = vsub.f32 %v94, %v803
    %v805 = vand.u32 %v804, 4294901760
    %806 = vmatpush1.msra.mxu0 %v805
    %807 = vmatprep.subr.mxu0 0.0
    %v808 = vand.u32 %v95, 4294901760
    %v809 = vsub.f32 %v95, %v808
    %v810 = vand.u32 %v809, 4294901760
    %811 = vmatpush1.msra.mxu0 %v810
    %812 = vmatprep.subr.mxu0 0.0
    %v813 = vand.u32 %v96, 4294901760
    %v814 = vsub.f32 %v96, %v813
    %v815 = vand.u32 %v814, 4294901760
    %816 = vmatpush1.msra.mxu0 %v815
    %817 = vmatprep.subr.mxu0 0.0
    %v818 = vand.u32 %v97, 4294901760
    %v819 = vsub.f32 %v97, %v818
    %v820 = vand.u32 %v819, 4294901760
    %821 = vmatpush1.msra.mxu0 %v820
    %822 = vmatprep.subr.mxu0 0.0
    %v823 = vand.u32 %v98, 4294901760
    %v824 = vsub.f32 %v98, %v823
    %v825 = vand.u32 %v824, 4294901760
    %826 = vmatpush1.msra.mxu0 %v825
    %827 = vmatprep.subr.mxu0 0.0
    %v828 = vand.u32 %v99, 4294901760
    %v829 = vsub.f32 %v99, %v828
    %v830 = vand.u32 %v829, 4294901760
    %831 = vmatpush1.msra.mxu0 %v830
    %832 = vmatprep.subr.mxu0 0.0
    %833 = vmatpush1.msra.mxu0 0.0
    %834 = vmatprep.subr.mxu0 0.0
    %835 = vmatpush1.msra.mxu0 0.0
    %836 = vmatprep.subr.mxu0 0.0
    %837 = vmatpush1.msra.mxu0 0.0
    %838 = vmatprep.subr.mxu0 0.0
    %839 = vmatpush1.msra.mxu0 0.0
    %840 = vmatprep.subr.mxu0 0.0
    %841 = vmatpush1.msra.mxu0 0.0
    %842 = vmatprep.subr.mxu0 0.0
    %843 = vmatpush1.msra.mxu0 0.0
    %844 = vmatprep.subr.mxu0 0.0
    %845 = vmatpush1.msra.mxu0 0.0
    %846 = vmatprep.subr.mxu0 0.0
    %847 = vmatpush1.msra.mxu0 0.0
    %848 = vmatprep.subr.mxu0 0.0
    %849 = vmatpush1.msra.mxu0 0.0
    %850 = vmatprep.subr.mxu0 0.0
    %851 = vmatpush1.msra.mxu0 0.0
    %852 = vmatprep.subr.mxu0 0.0
    %853 = vmatpush1.msra.mxu0 0.0
    %854 = vmatprep.subr.mxu0 0.0
    %855 = vmatpush1.msra.mxu0 0.0
    %856 = vmatprep.subr.mxu0 0.0
    %857 = vmatpush1.msra.mxu0 0.0
    %858 = vmatprep.subr.mxu0 0.0
    %859 = vmatpush1.msra.mxu0 0.0
    %860 = vmatprep.subr.mxu0 0.0
    %861 = vmatpush1.msra.mxu0 0.0
    %862 = vmatprep.subr.mxu0 0.0
    %863 = vmatpush1.msra.mxu0 0.0
    %864 = vmatprep.mubr.f32.mxu0 0.0
    %v865 = vand.u32 %v76, 4294901760
    %866 = vmatmul.mubr.f32.gmra.mrb[0].mxu0 %v865
    %v867 = vpop.f32.mrb[0].mxu0
    %v868 = vadd.f32 %v693, %v867
    %v869 = vpop.f32.mrb[0].mxu0
    %870 = vmatprep.mubr.f32.mxu0 0.0
    %v871 = vand.u32 %v77, 4294901760
    %872 = vmatmul.mubr.f32.gmra.mrb[0].mxu0 %v871
    %v873 = vpop.f32.mrb[0].mxu0
    %v874 = vadd.f32 %v701, %v873
    %v875 = vpop.f32.mrb[0].mxu0
    %876 = vmatprep.mubr.f32.mxu0 0.0
    %v877 = vand.u32 %v78, 4294901760
    %878 = vmatmul.mubr.f32.gmra.mrb[0].mxu0 %v877
    %v879 = vpop.f32.mrb[0].mxu0
    %v880 = vadd.f32 %v709, %v879
    %v881 = vpop.f32.mrb[0].mxu0
    %882 = vmatprep.mubr.f32.mxu0 0.0
    %v883 = vand.u32 %v79, 4294901760
    %884 = vmatmul.mubr.f32.gmra.mrb[0].mxu0 %v883
    %v885 = vpop.f32.mrb[0].mxu0
    %v886 = vadd.f32 %v717, %v885
    %v887 = vpop.f32.mrb[0].mxu0
    %888 = vmatprep.mubr.f32.mxu0 0.0
    %v889 = vand.u32 %v80, 4294901760
    %890 = vmatmul.mubr.f32.gmra.mrb[0].mxu0 %v889
    %v891 = vpop.f32.mrb[0].mxu0
    %v892 = vadd.f32 %v725, %v891
    %v893 = vpop.f32.mrb[0].mxu0
    %894 = vmatprep.mubr.f32.mxu0 0.0
    %v895 = vand.u32 %v81, 4294901760
    %896 = vmatmul.mubr.f32.gmra.mrb[0].mxu0 %v895
    %v897 = vpop.f32.mrb[0].mxu0
    %v898 = vadd.f32 %v733, %v897
    %v899 = vpop.f32.mrb[0].mxu0
    %900 = vmatprep.mubr.f32.mxu0 0.0
    %v901 = vand.u32 %v82, 4294901760
    %902 = vmatmul.mubr.f32.gmra.mrb[0].mxu0 %v901
    %v903 = vpop.f32.mrb[0].mxu0
    %v904 = vadd.f32 %v741, %v903
    %v905 = vpop.f32.mrb[0].mxu0
    %906 = vmatprep.mubr.f32.mxu0 0.0
    %v907 = vand.u32 %v83, 4294901760
    %908 = vmatmul.mubr.f32.gmra.mrb[0].mxu0 %v907
    %v909 = vpop.f32.mrb[0].mxu0
    %v910 = vadd.f32 %v749, %v909
    %v911 = vpop.f32.mrb[0].mxu0
    %912 = vdwg.mxu0
    %913 = vmatprep.subr.mxu0 0.0
    %v914 = vand.u32 %v84, 4294901760
    %915 = vmatpush1.msra.mxu0 %v914
    %916 = vmatprep.subr.mxu0 0.0
    %v917 = vand.u32 %v85, 4294901760
    %918 = vmatpush1.msra.mxu0 %v917
    %919 = vmatprep.subr.mxu0 0.0
    %v920 = vand.u32 %v86, 4294901760
    %921 = vmatpush1.msra.mxu0 %v920
    %922 = vmatprep.subr.mxu0 0.0
    %v923 = vand.u32 %v87, 4294901760
    %924 = vmatpush1.msra.mxu0 %v923
    %925 = vmatprep.subr.mxu0 0.0
    %v926 = vand.u32 %v88, 4294901760
    %927 = vmatpush1.msra.mxu0 %v926
    %928 = vmatprep.subr.mxu0 0.0
    %v929 = vand.u32 %v89, 4294901760
    %930 = vmatpush1.msra.mxu0 %v929
    %931 = vmatprep.subr.mxu0 0.0
    %v932 = vand.u32 %v90, 4294901760
    %933 = vmatpush1.msra.mxu0 %v932
    %934 = vmatprep.subr.mxu0 0.0
    %v935 = vand.u32 %v91, 4294901760
    %936 = vmatpush1.msra.mxu0 %v935
    %937 = vmatprep.subr.mxu0 0.0
    %v938 = vand.u32 %v92, 4294901760
    %939 = vmatpush1.msra.mxu0 %v938
    %940 = vmatprep.subr.mxu0 0.0
    %v941 = vand.u32 %v93, 4294901760
    %942 = vmatpush1.msra.mxu0 %v941
    %943 = vmatprep.subr.mxu0 0.0
    %v944 = vand.u32 %v94, 4294901760
    %945 = vmatpush1.msra.mxu0 %v944
    %946 = vmatprep.subr.mxu0 0.0
    %v947 = vand.u32 %v95, 4294901760
    %948 = vmatpush1.msra.mxu0 %v947
    %949 = vmatprep.subr.mxu0 0.0
    %v950 = vand.u32 %v96, 4294901760
    %951 = vmatpush1.msra.mxu0 %v950
    %952 = vmatprep.subr.mxu0 0.0
    %v953 = vand.u32 %v97, 4294901760
    %954 = vmatpush1.msra.mxu0 %v953
    %955 = vmatprep.subr.mxu0 0.0
    %v956 = vand.u32 %v98, 4294901760
    %957 = vmatpush1.msra.mxu0 %v956
    %958 = vmatprep.subr.mxu0 0.0
    %v959 = vand.u32 %v99, 4294901760
    %960 = vmatpush1.msra.mxu0 %v959
    %961 = vmatprep.subr.mxu0 0.0
    %962 = vmatpush1.msra.mxu0 0.0
    %963 = vmatprep.subr.mxu0 0.0
    %964 = vmatpush1.msra.mxu0 0.0
    %965 = vmatprep.subr.mxu0 0.0
    %966 = vmatpush1.msra.mxu0 0.0
    %967 = vmatprep.subr.mxu0 0.0
    %968 = vmatpush1.msra.mxu0 0.0
    %969 = vmatprep.subr.mxu0 0.0
    %970 = vmatpush1.msra.mxu0 0.0
    %971 = vmatprep.subr.mxu0 0.0
    %972 = vmatpush1.msra.mxu0 0.0
    %973 = vmatprep.subr.mxu0 0.0
    %974 = vmatpush1.msra.mxu0 0.0
    %975 = vmatprep.subr.mxu0 0.0
    %976 = vmatpush1.msra.mxu0 0.0
    %977 = vmatprep.subr.mxu0 0.0
    %978 = vmatpush1.msra.mxu0 0.0
    %979 = vmatprep.subr.mxu0 0.0
    %980 = vmatpush1.msra.mxu0 0.0
    %981 = vmatprep.subr.mxu0 0.0
    %982 = vmatpush1.msra.mxu0 0.0
    %983 = vmatprep.subr.mxu0 0.0
    %984 = vmatpush1.msra.mxu0 0.0
    %985 = vmatprep.subr.mxu0 0.0
    %986 = vmatpush1.msra.mxu0 0.0
    %987 = vmatprep.subr.mxu0 0.0
    %988 = vmatpush1.msra.mxu0 0.0
    %989 = vmatprep.subr.mxu0 0.0
    %990 = vmatpush1.msra.mxu0 0.0
    %991 = vmatprep.subr.mxu0 0.0
    %992 = vmatpush1.msra.mxu0 0.0
    %993 = vmatprep.mubr.f32.mxu0 0.0
    %v994 = vand.u32 %v76, 4294901760
    %995 = vmatmul.mubr.f32.gmra.mrb[0].mxu0 %v994
    %v996 = vpop.f32.mrb[0].mxu0
    %v997 = vadd.f32 %v868, %v996
    %v998 = vpop.f32.mrb[0].mxu0
    %999 = vmatprep.mubr.f32.mxu0 0.0
    %v1000 = vand.u32 %v77, 4294901760
    %1001 = vmatmul.mubr.f32.gmra.mrb[0].mxu0 %v1000
    %v1002 = vpop.f32.mrb[0].mxu0
    %v1003 = vadd.f32 %v874, %v1002
    %v1004 = vpop.f32.mrb[0].mxu0
    %1005 = vmatprep.mubr.f32.mxu0 0.0
    %v1006 = vand.u32 %v78, 4294901760
    %1007 = vmatmul.mubr.f32.gmra.mrb[0].mxu0 %v1006
    %v1008 = vpop.f32.mrb[0].mxu0
    %v1009 = vadd.f32 %v880, %v1008
    %v1010 = vpop.f32.mrb[0].mxu0
    %1011 = vmatprep.mubr.f32.mxu0 0.0
    %v1012 = vand.u32 %v79, 4294901760
    %1013 = vmatmul.mubr.f32.gmra.mrb[0].mxu0 %v1012
    %v1014 = vpop.f32.mrb[0].mxu0
    %v1015 = vadd.f32 %v886, %v1014
    %v1016 = vpop.f32.mrb[0].mxu0
    %1017 = vmatprep.mubr.f32.mxu0 0.0
    %v1018 = vand.u32 %v80, 4294901760
    %1019 = vmatmul.mubr.f32.gmra.mrb[0].mxu0 %v1018
    %v1020 = vpop.f32.mrb[0].mxu0
    %v1021 = vadd.f32 %v892, %v1020
    %v1022 = vpop.f32.mrb[0].mxu0
    %1023 = vmatprep.mubr.f32.mxu0 0.0
    %v1024 = vand.u32 %v81, 4294901760
    %1025 = vmatmul.mubr.f32.gmra.mrb[0].mxu0 %v1024
    %v1026 = vpop.f32.mrb[0].mxu0
    %v1027 = vadd.f32 %v898, %v1026
    %v1028 = vpop.f32.mrb[0].mxu0
    %1029 = vmatprep.mubr.f32.mxu0 0.0
    %v1030 = vand.u32 %v82, 4294901760
    %1031 = vmatmul.mubr.f32.gmra.mrb[0].mxu0 %v1030
    %v1032 = vpop.f32.mrb[0].mxu0
    %v1033 = vadd.f32 %v904, %v1032
    %v1034 = vpop.f32.mrb[0].mxu0
    %1035 = vmatprep.mubr.f32.mxu0 0.0
    %v1036 = vand.u32 %v83, 4294901760
    %1037 = vmatmul.mubr.f32.gmra.mrb[0].mxu0 %v1036
    %v1038 = vpop.f32.mrb[0].mxu0
    %v1039 = vadd.f32 %v910, %v1038
    %v1040 = vpop.f32.mrb[0].mxu0
    %1041 = vdwg.mxu0
    %1042 = vst [vmem:[#allocation5] sm:$0xff] %v997
    %1043 = vst [vmem:[#allocation5 + $0x8] sm:$0xff] %v1003
    %1044 = vst [vmem:[#allocation5 + $0x10] sm:$0xff] %v1009
    %1045 = vst [vmem:[#allocation5 + $0x18] sm:$0xff] %v1015
    %1046 = vst [vmem:[#allocation5 + $0x20] sm:$0xff] %v1021
    %1047 = vst [vmem:[#allocation5 + $0x28] sm:$0xff] %v1027
    %1048 = vst [vmem:[#allocation5 + $0x30] sm:$0xff] %v1033
    %1049 = vst [vmem:[#allocation5 + $0x38] sm:$0xff] %v1039
    // Predicated region
    $region14: #{tpu_custom_call.1} parent=1 // pred_check
      _
    $region15: #{tpu_custom_call.1} parent=1 // pred_check_branch
      %1051 = sbr.rel (0) target = $region17
    $region16: #{tpu_custom_call.1} parent=1 // pred_region
      %s1053 = ssub.s32 1024, 1024
      %1054 = vsyncadd [#allocation4], %s1053
      %s1055 = sshll.u32 [#allocation5], 4
      %s1056 = int_to_ptr.vmem [resolvable:$true] %s1055
      %1061 = dma.vmem_to_hbm [thread:$0]  %s1056, 1024, %s2, [#allocation4], 128, 128, 8
    $region17: #{tpu_custom_call.1} parent=1 // pred_fallthru
      _
    // Predicated region
    $region18: #{tpu_custom_call.1} parent=1 // pred_check
      _
    $region19: #{tpu_custom_call.1} parent=1 // pred_check_branch
      %1063 = sbr.rel (0) target = $region21
    $region20: #{tpu_custom_call.1} parent=1 // pred_region
      %1064 = dma.done [#allocation4], 1024
    $region21: #{tpu_custom_call.1} parent=1 // pred_fallthru
      _
    %1065 = vsyncpa [#allocation3], 1
    %1066 = vsyncpa [#allocation4], 1

</llo_original>
